<compile_context>
chip_gen: v6e
topology: v6e:2x2x1
jax: 0.10.0
libtpu: 0.0.40
codegen_flags: <defaults>
</compile_context>

<pallas_src>
import math
import jax
import jax.numpy as jnp
from jax.experimental import pallas as pl
from jax.experimental.pallas import tpu as pltpu


def _round_up(x, m):
    return ((x + m - 1) // m) * m


def _ff_kernel(x_ref, w1_ref, w2_ref, c_ref, o_ref, *scratch):
    """One (i, k) grid step: acc(i) += (x_i @ W1[:, k-chunk]) @ W2[k-chunk, :].

    c_ref holds the folded bias  c = b1 @ W2 + b2  (f32, shape (1, D_in_p)).
    If `scratch` is empty the output block itself (f32) is the accumulator.
    """
    acc_ref = scratch[0] if scratch else o_ref
    k = pl.program_id(1)

    @pl.when(k == 0)
    def _init():
        # Initialize the resident accumulator with the folded bias.
        acc_ref[...] = jnp.broadcast_to(c_ref[...], acc_ref.shape).astype(jnp.float32)

    # h_chunk = x @ W1[:, chunk]   (f32 accumulation on the MXU)
    h = jnp.dot(x_ref[...], w1_ref[...], preferred_element_type=jnp.float32)
    # acc += h_chunk @ W2[chunk, :]
    # (cast to the weight dtype for the 2nd matmul; no-op for f32 weights,
    #  intentional precision-reducing cast on the bf16 path)
    acc_ref[...] += jnp.dot(h.astype(w2_ref.dtype), w2_ref[...],
                            preferred_element_type=jnp.float32)

    if scratch:  # narrow output dtype: cast out of the f32 scratch at the end
        @pl.when(k == pl.num_programs(1) - 1)
        def _finalize():
            o_ref[...] = acc_ref[...].astype(o_ref.dtype)


def feed_forward_pallas(x, w1, b1, w2, b2, *, tm=None, tk=None, compute_dtype=None):
    """x: (M, D_in); w1: (D_in, D_mid); b1: (D_mid,); w2: (D_mid, D_in); b2: (D_in,)."""
    M, D_in = x.shape
    D_mid = w1.shape[1]
    out_dtype = x.dtype

    # Folded bias (computed in f32 from the original-precision params; a cheap
    # (D_mid x D_in) matvec done once in the wrapper).
    c = b1.astype(jnp.float32) @ w2.astype(jnp.float32) + b2.astype(jnp.float32)

    # Optional reduced-precision compute path: halves HBM weight traffic and
    # unlocks the native bf16 MXU rate; f32 accumulation is kept in-kernel.
    if compute_dtype is not None:
        x = x.astype(compute_dtype)
        w1 = w1.astype(compute_dtype)
        w2 = w2.astype(compute_dtype)

    # ---- VMEM budget (physical-capacity aware; v7x has only 64 MiB) -------
    try:
        vmem_cap = int(pltpu.get_tpu_info().vmem_capacity_bytes)
    except Exception:
        vmem_cap = 64 << 20          # conservative fallback (v7x)
    vmem_budget = int(vmem_cap * 0.75)

    # ---- Padding / tile selection ------------------------------------------
    ALIGN = 256                      # 256-wide MXU on v6e/v7x; multiple of 128 for v5e
    D_in_p = _round_up(D_in, ALIGN)  # lane-dense, MXU-aligned output width
    D_mid_p = _round_up(D_mid, ALIGN)

    xsz = jnp.dtype(x.dtype).itemsize
    wsz = jnp.dtype(w1.dtype).itemsize
    osz = jnp.dtype(out_dtype).itemsize
    acc_in_out = (out_dtype == jnp.float32)  # accumulate straight into o_ref
    sub = {4: 8, 2: 16, 1: 32}.get(xsz, 8)   # sublane tile for the input dtype

    def _tm_cap(tk_):
        # VMEM that does not scale with tm: W1 + W2 chunks (double-buffered) + c.
        fixed = 4 * D_in_p * tk_ * wsz + 2 * D_in_p * 4
        # Per-row bytes: x tile + out tile (double-buffered) + optional f32 scratch.
        per_row = D_in_p * (2 * xsz + 2 * osz + (0 if acc_in_out else 4))
        return max((vmem_budget - fixed) // per_row, sub)

    if tk is None:
        if D_mid_p <= 512:
            tk = D_mid_p                      # single chunk
        elif _tm_cap(512) >= 512:
            tk = 512                          # big chunk: less accumulator RMW traffic
        else:
            tk = 256                          # keep tm large on 64 MiB parts (v7x)
    D_mid_p = _round_up(D_mid_p, tk)

    if tm is None:
        tm = int(min(1024, _tm_cap(tk), _round_up(M, sub)))
        if tm >= 256:
            tm = (tm // 256) * 256            # MXU-friendly M tile
        else:
            tm = max((tm // sub) * sub, sub)
        if M <= tm:
            tm = _round_up(M, sub)
    M_p = _round_up(M, tm)

    # ---- Zero-pad operands only when needed (zeros keep the math exact).
    # TODO(synk): in a real model, pad/cache the weights once at init instead
    # of on every call -- padding is an extra HBM read+write of the weights.
    def _pad2(a, rows, cols):
        pr, pc = rows - a.shape[0], cols - a.shape[1]
        return a if (pr == 0 and pc == 0) else jnp.pad(a, ((0, pr), (0, pc)))

    x_p = _pad2(x, M_p, D_in_p)
    w1_p = _pad2(w1, D_in_p, D_mid_p)
    w2_p = _pad2(w2, D_mid_p, D_in_p)
    c_p = _pad2(c.reshape(1, D_in), 1, D_in_p)

    grid = (M_p // tm, D_mid_p // tk)
    n_mtiles = grid[0]

    # ---- VMEM limit (never exceeds physical capacity) ----------------------
    vmem_need = (4 * D_in_p * tk * wsz + 2 * D_in_p * 4
                 + tm * D_in_p * (2 * xsz + 2 * osz + (0 if acc_in_out else 4)))
    vmem_limit = int(min(max(int(vmem_need * 1.25), 16 << 20), int(vmem_cap * 0.9)))

    # ---- Cost estimate: weights are re-streamed once per M tile ------------
    cost = pl.CostEstimate(
        flops=2 * 2 * M_p * D_in_p * D_mid_p,   # two matmuls
        transcendentals=0,
        bytes_accessed=int(M_p * D_in_p * xsz                       # x
                           + n_mtiles * 2 * D_in_p * D_mid_p * wsz  # W1 + W2 per M tile
                           + n_mtiles * D_in_p * 4                  # folded bias
                           + M_p * D_in_p * osz),                   # output
    )

    scratch_shapes = [] if acc_in_out else [pltpu.VMEM((tm, D_in_p), jnp.float32)]

    out_p = pl.pallas_call(
        _ff_kernel,
        out_shape=jax.ShapeDtypeStruct((M_p, D_in_p), out_dtype),
        grid_spec=pltpu.PrefetchScalarGridSpec(
            num_scalar_prefetch=0,
            grid=grid,
            in_specs=[
                pl.BlockSpec((tm, D_in_p), lambda i, k: (i, 0)),   # x tile
                pl.BlockSpec((D_in_p, tk), lambda i, k: (0, k)),   # W1 chunk (streamed over N)
                pl.BlockSpec((tk, D_in_p), lambda i, k: (k, 0)),   # W2 chunk (streamed over K)
                pl.BlockSpec((1, D_in_p), lambda i, k: (0, 0)),    # folded bias
            ],
            out_specs=pl.BlockSpec((tm, D_in_p), lambda i, k: (i, 0)),
            scratch_shapes=scratch_shapes,
        ),
        compiler_params=pltpu.CompilerParams(
            dimension_semantics=("parallel", "arbitrary"),
            vmem_limit_bytes=vmem_limit,
        ),
        cost_estimate=cost,
    )(x_p, w1_p, w2_p, c_p)

    return out_p[:M, :D_in]


def init_linear_params(key, in_features, out_features, dtype=jnp.float32):
    # Deterministic init mimicking torch.nn.Linear: U(-1/sqrt(fan_in), 1/sqrt(fan_in))
    kw, kb = jax.random.split(key)
    bound = 1.0 / math.sqrt(in_features)
    # stored as (in_features, out_features) == PyTorch weight transposed
    w = jax.random.uniform(kw, (in_features, out_features), dtype,
                           minval=-bound, maxval=bound)
    b = jax.random.uniform(kb, (out_features,), dtype,
                           minval=-bound, maxval=bound)
    return w, b


if __name__ == "__main__":
    key = jax.random.PRNGKey(0)
    k_x, k_fc1, k_fc2 = jax.random.split(key, 3)

    batch = 8
    input_length = 32
    mid_length = 64

    x = jax.random.normal(k_x, (batch, input_length), jnp.float32)
    w1, b1 = init_linear_params(k_fc1, input_length, mid_length)
    w2, b2 = init_linear_params(k_fc2, mid_length, input_length)

    y = feed_forward_pallas(x, w1, b1, w2, b2)
    jax.block_until_ready(y)

    # Pure-JAX reference check (same math as the PyTorch module)
    y_ref = (x @ w1 + b1) @ w2 + b2
    assert y.shape == (batch, input_length)
    assert jnp.allclose(y, y_ref, atol=1e-4, rtol=1e-4), float(jnp.max(jnp.abs(y - y_ref)))

    print("KERNEL_OK")
</pallas_src>

<mosaic_0001>
module attributes {stable_mosaic.version = 11 : i64} {
  func.func @_ff_kernel(%arg0: i32, %arg1: i32, %arg2: memref<8x256xf32, #tpu.memory_space<vmem>>, %arg3: memref<256x256xf32, #tpu.memory_space<vmem>>, %arg4: memref<256x256xf32, #tpu.memory_space<vmem>>, %arg5: memref<1x256xf32, #tpu.memory_space<vmem>>, %arg6: memref<8x256xf32, #tpu.memory_space<vmem>>) attributes {dimension_semantics = [#tpu.dimension_semantics<parallel>, #tpu.dimension_semantics<arbitrary>], iteration_bounds = array<i64: 1, 1>, scalar_prefetch = 0 : i64, scratch_operands = 0 : i64, tpu.core_type = #tpu.core_type<tc>, window_params = [{transform_indices = @transform_0, window_bounds = array<i64: 8, 256>}, {transform_indices = @transform_1, window_bounds = array<i64: 256, 256>}, {transform_indices = @transform_2, window_bounds = array<i64: 256, 256>}, {pipeline_mode = #tpu.pipeline_mode<synchronous>, transform_indices = @transform_3, window_bounds = array<i64: 1, 256>}, {transform_indices = @transform_4, window_bounds = array<i64: 8, 256>}]} {
    %c0_i32 = arith.constant 0 : i32
    %0 = arith.cmpi eq, %arg1, %c0_i32 : i32
    %1 = arith.extui %0 : i1 to i32
    %c0_i32_0 = arith.constant 0 : i32
    %2 = arith.cmpi ne, %1, %c0_i32_0 : i32
    scf.if %2 {
      %c0_11 = arith.constant 0 : index
      %c0_12 = arith.constant 0 : index
      %11 = vector.load %arg5[%c0_11, %c0_12] : memref<1x256xf32, #tpu.memory_space<vmem>>, vector<1x256xf32>
      %12 = vector.shape_cast %11 : vector<1x256xf32> to vector<1x256xf32>
      %13 = vector.broadcast %12 : vector<1x256xf32> to vector<8x256xf32>
      %c0_13 = arith.constant 0 : index
      %c0_14 = arith.constant 0 : index
      %14 = vector.load %arg6[%c0_13, %c0_14] : memref<8x256xf32, #tpu.memory_space<vmem>>, vector<8x256xf32>
      tpu.vector_store %arg6[%c0_13, %c0_14], %13 {strides = array<i32>} : memref<8x256xf32, #tpu.memory_space<vmem>>, vector<8x256xf32>,
    } else {
    }
    %c0 = arith.constant 0 : index
    %c0_1 = arith.constant 0 : index
    %3 = vector.load %arg2[%c0, %c0_1] : memref<8x256xf32, #tpu.memory_space<vmem>>, vector<8x256xf32>
    %c0_2 = arith.constant 0 : index
    %c0_3 = arith.constant 0 : index
    %4 = vector.load %arg3[%c0_2, %c0_3] : memref<256x256xf32, #tpu.memory_space<vmem>>, vector<256x256xf32>
    %cst = arith.constant dense<0.000000e+00> : vector<8x256xf32>
    %5 = tpu.matmul %3, %4, %cst {dimension_numbers = #tpu.dot_dimension_numbers<[1], [0], [0], [1], [0, 0, 1, 1], [], []>} : vector<8x256xf32>, vector<256x256xf32>, vector<8x256xf32> -> vector<8x256xf32>
    %c0_4 = arith.constant 0 : index
    %c0_5 = arith.constant 0 : index
    %6 = vector.load %arg6[%c0_4, %c0_5] : memref<8x256xf32, #tpu.memory_space<vmem>>, vector<8x256xf32>
    %c0_6 = arith.constant 0 : index
    %c0_7 = arith.constant 0 : index
    %7 = vector.load %arg4[%c0_6, %c0_7] : memref<256x256xf32, #tpu.memory_space<vmem>>, vector<256x256xf32>
    %cst_8 = arith.constant dense<0.000000e+00> : vector<8x256xf32>
    %8 = tpu.matmul %5, %7, %cst_8 {dimension_numbers = #tpu.dot_dimension_numbers<[1], [0], [0], [1], [0, 0, 1, 1], [], []>} : vector<8x256xf32>, vector<256x256xf32>, vector<8x256xf32> -> vector<8x256xf32>
    %9 = arith.addf %6, %8 : vector<8x256xf32>
    %c0_9 = arith.constant 0 : index
    %c0_10 = arith.constant 0 : index
    %10 = vector.load %arg6[%c0_9, %c0_10] : memref<8x256xf32, #tpu.memory_space<vmem>>, vector<8x256xf32>
    tpu.vector_store %arg6[%c0_9, %c0_10], %9 {strides = array<i32>} : memref<8x256xf32, #tpu.memory_space<vmem>>, vector<8x256xf32>,
    return
  }
  func.func @transform_0(%arg0: i32, %arg1: i32) -> (i32, i32) {
    %c0_i32 = arith.constant 0 : i32
    %c0_i32_0 = arith.constant 0 : i32
    return %arg0, %c0_i32 : i32, i32
  }
  func.func @transform_1(%arg0: i32, %arg1: i32) -> (i32, i32) {
    %c0_i32 = arith.constant 0 : i32
    %c0_i32_0 = arith.constant 0 : i32
    return %c0_i32, %arg1 : i32, i32
  }
  func.func @transform_2(%arg0: i32, %arg1: i32) -> (i32, i32) {
    %c0_i32 = arith.constant 0 : i32
    %c0_i32_0 = arith.constant 0 : i32
    return %arg1, %c0_i32 : i32, i32
  }
  func.func @transform_3(%arg0: i32, %arg1: i32) -> (i32, i32) {
    %c0_i32 = arith.constant 0 : i32
    %c0_i32_0 = arith.constant 0 : i32
    %c0_i32_1 = arith.constant 0 : i32
    return %c0_i32, %c0_i32_0 : i32, i32
  }
  func.func @transform_4(%arg0: i32, %arg1: i32) -> (i32, i32) {
    %c0_i32 = arith.constant 0 : i32
    %c0_i32_0 = arith.constant 0 : i32
    return %arg0, %c0_i32 : i32, i32
  }
}

</mosaic_0001>

<llo_original>
// kernel: tpu_custom_call.1
$region0: #{tpu_custom_call.1}
  #allocation0 [shape = 'u32[]', space=smem, size = 0x4, offset = 0x4, fixed_abs, tag = 'smem constant byte address 0x4 - core index']
  #allocation1 [shape = 'u32[144,128]{1,0:T(1,128)}', space=vmem, size = 0x12000, scoped, tag = 'internal scratch']
  %s0 = inlined_call_operand.hbm [shape: f32[8,256], index: 0, kind: input, shape index: {}]
  %s1 = inlined_call_operand.hbm [shape: f32[256,256], index: 1, kind: input, shape index: {}]
  %s2 = inlined_call_operand.hbm [shape: f32[256,256], index: 2, kind: input, shape index: {}]
  %s3 = inlined_call_operand.vmem [shape: f32[1,256], index: 3, kind: input, shape index: {}]
  %s4 = inlined_call_operand.hbm [shape: f32[8,256], index: 4, kind: output, shape index: {}]
  %s5 = sld [smem:[#allocation0]]
  $region42: #{tpu_custom_call.1} parent=0
    _
  %s7 = ssub.s32 1, %s5
  %s8 = scalar_select 0, %s7, %s5
  $region1: #{tpu_custom_call.1} parent=0
    #allocation2 [shape = 'u8[8192]{0}', space=vmem, size = 0x2000, scoped, tag = 'input window, operand 0, single buffered']
    #allocation3 [shape = 's32[1]{0}', space=sflag, size = 0x4, scoped, tag = 'scoped memory for tpu_custom_call.1']
    #allocation4 [shape = 's32[1]{0}', space=sflag, size = 0x4, scoped, tag = 'scoped memory for tpu_custom_call.1']
    #allocation5 [shape = 'u8[262144]{0}', space=vmem, size = 0x40000, scoped, tag = 'input window, operand 1, single buffered']
    #allocation6 [shape = 's32[1]{0}', space=sflag, size = 0x4, scoped, tag = 'scoped memory for tpu_custom_call.1']
    #allocation7 [shape = 'u8[262144]{0}', space=vmem, size = 0x40000, scoped, tag = 'input window, operand 2, single buffered']
    #allocation8 [shape = 'u8[8192]{0}', space=vmem, size = 0x2000, scoped, tag = 'output window, operand 0, single buffered']
    %9 = vsyncpa [#allocation3], 0
    %10 = vsyncpa [#allocation6], 0
    %11 = vsyncpa [#allocation4], 0
    // Predicated region
    $region2: #{tpu_custom_call.1} parent=1 // pred_check
      _
    $region3: #{tpu_custom_call.1} parent=1 // pred_check_branch
      %13 = sbr.rel (0) target = $region5
    $region4: #{tpu_custom_call.1} parent=1 // pred_region
      %s15 = ssub.s32 256, 256
      %16 = vsyncadd [#allocation3], %s15
      %s18 = sshll.u32 [#allocation2], 4
      %s19 = int_to_ptr.vmem [resolvable:$true] %s18
      %21 = dma.hbm_to_vmem [thread:$0]  %s0, 256, %s19, [#allocation3]
    $region5: #{tpu_custom_call.1} parent=1 // pred_fallthru
      _
    // Predicated region
    $region6: #{tpu_custom_call.1} parent=1 // pred_check
      _
    $region7: #{tpu_custom_call.1} parent=1 // pred_check_branch
      %23 = sbr.rel (0) target = $region9
    $region8: #{tpu_custom_call.1} parent=1 // pred_region
      %s25 = ssub.s32 8192, 8192
      %26 = vsyncadd [#allocation6], %s25
      %s27 = sshll.u32 [#allocation5], 4
      %s28 = int_to_ptr.vmem [resolvable:$true] %s27
      %33 = dma.hbm_to_vmem [thread:$0]  %s1, 8192, %s28, [#allocation6], 256, 256, 16
    $region9: #{tpu_custom_call.1} parent=1 // pred_fallthru
      _
    // Predicated region
    $region10: #{tpu_custom_call.1} parent=1 // pred_check
      _
    $region11: #{tpu_custom_call.1} parent=1 // pred_check_branch
      %35 = sbr.rel (0) target = $region13
    $region12: #{tpu_custom_call.1} parent=1 // pred_region
      %s37 = ssub.s32 8192, 8192
      %38 = vsyncadd [#allocation6], %s37
      %s39 = sshll.u32 [#allocation7], 4
      %s40 = int_to_ptr.vmem [resolvable:$true] %s39
      %45 = dma.hbm_to_vmem [thread:$0]  %s2, 8192, %s40, [#allocation6], 256, 256, 16
    $region13: #{tpu_custom_call.1} parent=1 // pred_fallthru
      _
    // Predicated region
    $region14: #{tpu_custom_call.1} parent=1 // pred_check
      _
    $region15: #{tpu_custom_call.1} parent=1 // pred_check_branch
      %47 = sbr.rel (0) target = $region17
    $region16: #{tpu_custom_call.1} parent=1 // pred_region
      _
    $region17: #{tpu_custom_call.1} parent=1 // pred_fallthru
      _
    // Predicated region
    $region18: #{tpu_custom_call.1} parent=1 // pred_check
      _
    $region19: #{tpu_custom_call.1} parent=1 // pred_check_branch
      %49 = sbr.rel (0) target = $region21
    $region20: #{tpu_custom_call.1} parent=1 // pred_region
      %50 = dma.done [#allocation3], 256
    $region21: #{tpu_custom_call.1} parent=1 // pred_fallthru
      _
    // Predicated region
    $region22: #{tpu_custom_call.1} parent=1 // pred_check
      _
    $region23: #{tpu_custom_call.1} parent=1 // pred_check_branch
      %52 = sbr.rel (0) target = $region25
    $region24: #{tpu_custom_call.1} parent=1 // pred_region
      %53 = dma.done [#allocation6], 8192
    $region25: #{tpu_custom_call.1} parent=1 // pred_fallthru
      _
    // Predicated region
    $region26: #{tpu_custom_call.1} parent=1 // pred_check
      _
    $region27: #{tpu_custom_call.1} parent=1 // pred_check_branch
      %55 = sbr.rel (0) target = $region29
    $region28: #{tpu_custom_call.1} parent=1 // pred_region
      %56 = dma.done [#allocation6], 8192
    $region29: #{tpu_custom_call.1} parent=1 // pred_fallthru
      _
    %p57 = scmp.eq.s32.totalorder 0, 0
    // Predicated region
    $region30: #{tpu_custom_call.1} parent=1 // pred_check
      %p58 = pneg %p57
    $region31: #{tpu_custom_call.1} parent=1 // pred_check_branch
      %60 = sbr.rel (%p58) target = $region33
    $region32: #{tpu_custom_call.1} parent=1 // pred_region
      %v61 = vld [vmem:[%s3] sm:$0x3]
      %v63 = vlaneseq
      %v64 = vshrl.u32 %v63, 7
      %v65 = vsub.s32 0, %v64
      %v66 = vrot.slane %v61, %v65
      %v67 = vlaneseq
      %v68 = vshrl.u32 %v67, 7
      %v69 = vsub.s32 1, %v68
      %v70 = vrot.slane %v61, %v69
      %73 = vst [vmem:[#allocation8] sm:$0xff] %v66
      %74 = vst [vmem:[#allocation8 + $0x8] sm:$0xff] %v70
    $region33: #{tpu_custom_call.1} parent=1 // pred_fallthru
      _
    %v75 = vld [vmem:[#allocation2] sm:$0xff]
    %v76 = vld [vmem:[#allocation2 + $0x8] sm:$0xff]
    %v77 = vld [vmem:[#allocation5] sm:$0xff]
    %v78 = vld [vmem:[#allocation5 + $0x8] sm:$0xff]
    %v79 = vld [vmem:[#allocation5 + $0x10] sm:$0xff]
    %v80 = vld [vmem:[#allocation5 + $0x18] sm:$0xff]
    %v81 = vld [vmem:[#allocation5 + $0x20] sm:$0xff]
    %v82 = vld [vmem:[#allocation5 + $0x28] sm:$0xff]
    %v83 = vld [vmem:[#allocation5 + $0x30] sm:$0xff]
    %v84 = vld [vmem:[#allocation5 + $0x38] sm:$0xff]
    %v85 = vld [vmem:[#allocation5 + $0x40] sm:$0xff]
    %v86 = vld [vmem:[#allocation5 + $0x48] sm:$0xff]
    %v87 = vld [vmem:[#allocation5 + $0x50] sm:$0xff]
    %v88 = vld [vmem:[#allocation5 + $0x58] sm:$0xff]
    %v89 = vld [vmem:[#allocation5 + $0x60] sm:$0xff]
    %v90 = vld [vmem:[#allocation5 + $0x68] sm:$0xff]
    %v91 = vld [vmem:[#allocation5 + $0x70] sm:$0xff]
    %v92 = vld [vmem:[#allocation5 + $0x78] sm:$0xff]
    %v93 = vld [vmem:[#allocation5 + $0x80] sm:$0xff]
    %v94 = vld [vmem:[#allocation5 + $0x88] sm:$0xff]
    %v95 = vld [vmem:[#allocation5 + $0x90] sm:$0xff]
    %v96 = vld [vmem:[#allocation5 + $0x98] sm:$0xff]
    %v97 = vld [vmem:[#allocation5 + $0xa0] sm:$0xff]
    %v98 = vld [vmem:[#allocation5 + $0xa8] sm:$0xff]
    %v99 = vld [vmem:[#allocation5 + $0xb0] sm:$0xff]
    %v100 = vld [vmem:[#allocation5 + $0xb8] sm:$0xff]
    %v101 = vld [vmem:[#allocation5 + $0xc0] sm:$0xff]
    %v102 = vld [vmem:[#allocation5 + $0xc8] sm:$0xff]
    %v103 = vld [vmem:[#allocation5 + $0xd0] sm:$0xff]
    %v104 = vld [vmem:[#allocation5 + $0xd8] sm:$0xff]
    %v105 = vld [vmem:[#allocation5 + $0xe0] sm:$0xff]
    %v106 = vld [vmem:[#allocation5 + $0xe8] sm:$0xff]
    %v107 = vld [vmem:[#allocation5 + $0xf0] sm:$0xff]
    %v108 = vld [vmem:[#allocation5 + $0xf8] sm:$0xff]
    %v109 = vld [vmem:[#allocation5 + $0x100] sm:$0xff]
    %v110 = vld [vmem:[#allocation5 + $0x108] sm:$0xff]
    %v111 = vld [vmem:[#allocation5 + $0x110] sm:$0xff]
    %v112 = vld [vmem:[#allocation5 + $0x118] sm:$0xff]
    %v113 = vld [vmem:[#allocation5 + $0x120] sm:$0xff]
    %v114 = vld [vmem:[#allocation5 + $0x128] sm:$0xff]
    %v115 = vld [vmem:[#allocation5 + $0x130] sm:$0xff]
    %v116 = vld [vmem:[#allocation5 + $0x138] sm:$0xff]
    %v117 = vld [vmem:[#allocation5 + $0x140] sm:$0xff]
    %v118 = vld [vmem:[#allocation5 + $0x148] sm:$0xff]
    %v119 = vld [vmem:[#allocation5 + $0x150] sm:$0xff]
    %v120 = vld [vmem:[#allocation5 + $0x158] sm:$0xff]
    %v121 = vld [vmem:[#allocation5 + $0x160] sm:$0xff]
    %v122 = vld [vmem:[#allocation5 + $0x168] sm:$0xff]
    %v123 = vld [vmem:[#allocation5 + $0x170] sm:$0xff]
    %v124 = vld [vmem:[#allocation5 + $0x178] sm:$0xff]
    %v125 = vld [vmem:[#allocation5 + $0x180] sm:$0xff]
    %v126 = vld [vmem:[#allocation5 + $0x188] sm:$0xff]
    %v127 = vld [vmem:[#allocation5 + $0x190] sm:$0xff]
    %v128 = vld [vmem:[#allocation5 + $0x198] sm:$0xff]
    %v129 = vld [vmem:[#allocation5 + $0x1a0] sm:$0xff]
    %v130 = vld [vmem:[#allocation5 + $0x1a8] sm:$0xff]
    %v131 = vld [vmem:[#allocation5 + $0x1b0] sm:$0xff]
    %v132 = vld [vmem:[#allocation5 + $0x1b8] sm:$0xff]
    %v133 = vld [vmem:[#allocation5 + $0x1c0] sm:$0xff]
    %v134 = vld [vmem:[#allocation5 + $0x1c8] sm:$0xff]
    %v135 = vld [vmem:[#allocation5 + $0x1d0] sm:$0xff]
    %v136 = vld [vmem:[#allocation5 + $0x1d8] sm:$0xff]
    %v137 = vld [vmem:[#allocation5 + $0x1e0] sm:$0xff]
    %v138 = vld [vmem:[#allocation5 + $0x1e8] sm:$0xff]
    %v139 = vld [vmem:[#allocation5 + $0x1f0] sm:$0xff]
    %v140 = vld [vmem:[#allocation5 + $0x1f8] sm:$0xff]
    %141 = vmatprep.subr.mxu0 %v108
    %142 = vmatpush1.msra.mxu0 %v107
    %143 = vmatprep.subr.mxu0 %v106
    %144 = vmatpush1.msra.mxu0 %v105
    %145 = vmatprep.subr.mxu0 %v104
    %146 = vmatpush1.msra.mxu0 %v103
    %147 = vmatprep.subr.mxu0 %v102
    %148 = vmatpush1.msra.mxu0 %v101
    %149 = vmatprep.subr.mxu0 %v100
    %150 = vmatpush1.msra.mxu0 %v99
    %151 = vmatprep.subr.mxu0 %v98
    %152 = vmatpush1.msra.mxu0 %v97
    %153 = vmatprep.subr.mxu0 %v96
    %154 = vmatpush1.msra.mxu0 %v95
    %155 = vmatprep.subr.mxu0 %v94
    %156 = vmatpush1.msra.mxu0 %v93
    %157 = vmatprep.subr.mxu0 %v92
    %158 = vmatpush1.msra.mxu0 %v91
    %159 = vmatprep.subr.mxu0 %v90
    %160 = vmatpush1.msra.mxu0 %v89
    %161 = vmatprep.subr.mxu0 %v88
    %162 = vmatpush1.msra.mxu0 %v87
    %163 = vmatprep.subr.mxu0 %v86
    %164 = vmatpush1.msra.mxu0 %v85
    %165 = vmatprep.subr.mxu0 %v84
    %166 = vmatpush1.msra.mxu0 %v83
    %167 = vmatprep.subr.mxu0 %v82
    %168 = vmatpush1.msra.mxu0 %v81
    %169 = vmatprep.subr.mxu0 %v80
    %170 = vmatpush1.msra.mxu0 %v79
    %171 = vmatprep.subr.mxu0 %v78
    %172 = vmatpush1.msra.mxu0 %v77
    %173 = vmatprep.subr.mxu0 %v140
    %174 = vmatpush2.msra.mxu0 %v139
    %175 = vmatprep.subr.mxu0 %v138
    %176 = vmatpush2.msra.mxu0 %v137
    %177 = vmatprep.subr.mxu0 %v136
    %178 = vmatpush2.msra.mxu0 %v135
    %179 = vmatprep.subr.mxu0 %v134
    %180 = vmatpush2.msra.mxu0 %v133
    %181 = vmatprep.subr.mxu0 %v132
    %182 = vmatpush2.msra.mxu0 %v131
    %183 = vmatprep.subr.mxu0 %v130
    %184 = vmatpush2.msra.mxu0 %v129
    %185 = vmatprep.subr.mxu0 %v128
    %186 = vmatpush2.msra.mxu0 %v127
    %187 = vmatprep.subr.mxu0 %v126
    %188 = vmatpush2.msra.mxu0 %v125
    %189 = vmatprep.subr.mxu0 %v124
    %190 = vmatpush2.msra.mxu0 %v123
    %191 = vmatprep.subr.mxu0 %v122
    %192 = vmatpush2.msra.mxu0 %v121
    %193 = vmatprep.subr.mxu0 %v120
    %194 = vmatpush2.msra.mxu0 %v119
    %195 = vmatprep.subr.mxu0 %v118
    %196 = vmatpush2.msra.mxu0 %v117
    %197 = vmatprep.subr.mxu0 %v116
    %198 = vmatpush2.msra.mxu0 %v115
    %199 = vmatprep.subr.mxu0 %v114
    %200 = vmatpush2.msra.mxu0 %v113
    %201 = vmatprep.subr.mxu0 %v112
    %202 = vmatpush2.msra.mxu0 %v111
    %203 = vmatprep.subr.mxu0 %v110
    %204 = vmatpush2.msra.mxu0 %v109
    %205 = vmatprep.mubr.f32.mxu0 %v76
    %206 = vmatmul.mubr.f32.gmra.mxu0 %v75
    %v207 = vpop.f32.mrf.mxu0
    %v208 = vadd.f32 0.0, %v207
    %v209 = vpop.f32.mrf.mxu0
    %v210 = vadd.f32 0.0, %v209
    %211 = vdwg.mxu0
    %v212 = vld [vmem:[#allocation8] sm:$0xff]
    %v213 = vld [vmem:[#allocation8 + $0x8] sm:$0xff]
    %v214 = vld [vmem:[#allocation7] sm:$0xff]
    %v215 = vld [vmem:[#allocation7 + $0x8] sm:$0xff]
    %v216 = vld [vmem:[#allocation7 + $0x10] sm:$0xff]
    %v217 = vld [vmem:[#allocation7 + $0x18] sm:$0xff]
    %v218 = vld [vmem:[#allocation7 + $0x20] sm:$0xff]
    %v219 = vld [vmem:[#allocation7 + $0x28] sm:$0xff]
    %v220 = vld [vmem:[#allocation7 + $0x30] sm:$0xff]
    %v221 = vld [vmem:[#allocation7 + $0x38] sm:$0xff]
    %v222 = vld [vmem:[#allocation7 + $0x40] sm:$0xff]
    %v223 = vld [vmem:[#allocation7 + $0x48] sm:$0xff]
    %v224 = vld [vmem:[#allocation7 + $0x50] sm:$0xff]
    %v225 = vld [vmem:[#allocation7 + $0x58] sm:$0xff]
    %v226 = vld [vmem:[#allocation7 + $0x60] sm:$0xff]
    %v227 = vld [vmem:[#allocation7 + $0x68] sm:$0xff]
    %v228 = vld [vmem:[#allocation7 + $0x70] sm:$0xff]
    %v229 = vld [vmem:[#allocation7 + $0x78] sm:$0xff]
    %v230 = vld [vmem:[#allocation7 + $0x80] sm:$0xff]
    %v231 = vld [vmem:[#allocation7 + $0x88] sm:$0xff]
    %v232 = vld [vmem:[#allocation7 + $0x90] sm:$0xff]
    %v233 = vld [vmem:[#allocation7 + $0x98] sm:$0xff]
    %v234 = vld [vmem:[#allocation7 + $0xa0] sm:$0xff]
    %v235 = vld [vmem:[#allocation7 + $0xa8] sm:$0xff]
    %v236 = vld [vmem:[#allocation7 + $0xb0] sm:$0xff]
    %v237 = vld [vmem:[#allocation7 + $0xb8] sm:$0xff]
    %v238 = vld [vmem:[#allocation7 + $0xc0] sm:$0xff]
    %v239 = vld [vmem:[#allocation7 + $0xc8] sm:$0xff]
    %v240 = vld [vmem:[#allocation7 + $0xd0] sm:$0xff]
    %v241 = vld [vmem:[#allocation7 + $0xd8] sm:$0xff]
    %v242 = vld [vmem:[#allocation7 + $0xe0] sm:$0xff]
    %v243 = vld [vmem:[#allocation7 + $0xe8] sm:$0xff]
    %v244 = vld [vmem:[#allocation7 + $0xf0] sm:$0xff]
    %v245 = vld [vmem:[#allocation7 + $0xf8] sm:$0xff]
    %v246 = vld [vmem:[#allocation7 + $0x100] sm:$0xff]
    %v247 = vld [vmem:[#allocation7 + $0x108] sm:$0xff]
    %v248 = vld [vmem:[#allocation7 + $0x110] sm:$0xff]
    %v249 = vld [vmem:[#allocation7 + $0x118] sm:$0xff]
    %v250 = vld [vmem:[#allocation7 + $0x120] sm:$0xff]
    %v251 = vld [vmem:[#allocation7 + $0x128] sm:$0xff]
    %v252 = vld [vmem:[#allocation7 + $0x130] sm:$0xff]
    %v253 = vld [vmem:[#allocation7 + $0x138] sm:$0xff]
    %v254 = vld [vmem:[#allocation7 + $0x140] sm:$0xff]
    %v255 = vld [vmem:[#allocation7 + $0x148] sm:$0xff]
    %v256 = vld [vmem:[#allocation7 + $0x150] sm:$0xff]
    %v257 = vld [vmem:[#allocation7 + $0x158] sm:$0xff]
    %v258 = vld [vmem:[#allocation7 + $0x160] sm:$0xff]
    %v259 = vld [vmem:[#allocation7 + $0x168] sm:$0xff]
    %v260 = vld [vmem:[#allocation7 + $0x170] sm:$0xff]
    %v261 = vld [vmem:[#allocation7 + $0x178] sm:$0xff]
    %v262 = vld [vmem:[#allocation7 + $0x180] sm:$0xff]
    %v263 = vld [vmem:[#allocation7 + $0x188] sm:$0xff]
    %v264 = vld [vmem:[#allocation7 + $0x190] sm:$0xff]
    %v265 = vld [vmem:[#allocation7 + $0x198] sm:$0xff]
    %v266 = vld [vmem:[#allocation7 + $0x1a0] sm:$0xff]
    %v267 = vld [vmem:[#allocation7 + $0x1a8] sm:$0xff]
    %v268 = vld [vmem:[#allocation7 + $0x1b0] sm:$0xff]
    %v269 = vld [vmem:[#allocation7 + $0x1b8] sm:$0xff]
    %v270 = vld [vmem:[#allocation7 + $0x1c0] sm:$0xff]
    %v271 = vld [vmem:[#allocation7 + $0x1c8] sm:$0xff]
    %v272 = vld [vmem:[#allocation7 + $0x1d0] sm:$0xff]
    %v273 = vld [vmem:[#allocation7 + $0x1d8] sm:$0xff]
    %v274 = vld [vmem:[#allocation7 + $0x1e0] sm:$0xff]
    %v275 = vld [vmem:[#allocation7 + $0x1e8] sm:$0xff]
    %v276 = vld [vmem:[#allocation7 + $0x1f0] sm:$0xff]
    %v277 = vld [vmem:[#allocation7 + $0x1f8] sm:$0xff]
    %278 = vmatprep.subr.mxu0 %v245
    %279 = vmatpush1.msra.mxu0 %v244
    %280 = vmatprep.subr.mxu0 %v243
    %281 = vmatpush1.msra.mxu0 %v242
    %282 = vmatprep.subr.mxu0 %v241
    %283 = vmatpush1.msra.mxu0 %v240
    %284 = vmatprep.subr.mxu0 %v239
    %285 = vmatpush1.msra.mxu0 %v238
    %286 = vmatprep.subr.mxu0 %v237
    %287 = vmatpush1.msra.mxu0 %v236
    %288 = vmatprep.subr.mxu0 %v235
    %289 = vmatpush1.msra.mxu0 %v234
    %290 = vmatprep.subr.mxu0 %v233
    %291 = vmatpush1.msra.mxu0 %v232
    %292 = vmatprep.subr.mxu0 %v231
    %293 = vmatpush1.msra.mxu0 %v230
    %294 = vmatprep.subr.mxu0 %v229
    %295 = vmatpush1.msra.mxu0 %v228
    %296 = vmatprep.subr.mxu0 %v227
    %297 = vmatpush1.msra.mxu0 %v226
    %298 = vmatprep.subr.mxu0 %v225
    %299 = vmatpush1.msra.mxu0 %v224
    %300 = vmatprep.subr.mxu0 %v223
    %301 = vmatpush1.msra.mxu0 %v222
    %302 = vmatprep.subr.mxu0 %v221
    %303 = vmatpush1.msra.mxu0 %v220
    %304 = vmatprep.subr.mxu0 %v219
    %305 = vmatpush1.msra.mxu0 %v218
    %306 = vmatprep.subr.mxu0 %v217
    %307 = vmatpush1.msra.mxu0 %v216
    %308 = vmatprep.subr.mxu0 %v215
    %309 = vmatpush1.msra.mxu0 %v214
    %310 = vmatprep.subr.mxu0 %v277
    %311 = vmatpush2.msra.mxu0 %v276
    %312 = vmatprep.subr.mxu0 %v275
    %313 = vmatpush2.msra.mxu0 %v274
    %314 = vmatprep.subr.mxu0 %v273
    %315 = vmatpush2.msra.mxu0 %v272
    %316 = vmatprep.subr.mxu0 %v271
    %317 = vmatpush2.msra.mxu0 %v270
    %318 = vmatprep.subr.mxu0 %v269
    %319 = vmatpush2.msra.mxu0 %v268
    %320 = vmatprep.subr.mxu0 %v267
    %321 = vmatpush2.msra.mxu0 %v266
    %322 = vmatprep.subr.mxu0 %v265
    %323 = vmatpush2.msra.mxu0 %v264
    %324 = vmatprep.subr.mxu0 %v263
    %325 = vmatpush2.msra.mxu0 %v262
    %326 = vmatprep.subr.mxu0 %v261
    %327 = vmatpush2.msra.mxu0 %v260
    %328 = vmatprep.subr.mxu0 %v259
    %329 = vmatpush2.msra.mxu0 %v258
    %330 = vmatprep.subr.mxu0 %v257
    %331 = vmatpush2.msra.mxu0 %v256
    %332 = vmatprep.subr.mxu0 %v255
    %333 = vmatpush2.msra.mxu0 %v254
    %334 = vmatprep.subr.mxu0 %v253
    %335 = vmatpush2.msra.mxu0 %v252
    %336 = vmatprep.subr.mxu0 %v251
    %337 = vmatpush2.msra.mxu0 %v250
    %338 = vmatprep.subr.mxu0 %v249
    %339 = vmatpush2.msra.mxu0 %v248
    %340 = vmatprep.subr.mxu0 %v247
    %341 = vmatpush2.msra.mxu0 %v246
    %342 = vmatprep.mubr.f32.mxu0 %v210
    %343 = vmatmul.mubr.f32.gmra.mxu0 %v208
    %v344 = vpop.f32.mrf.mxu0
    %v345 = vadd.f32 0.0, %v344
    %v346 = vpop.f32.mrf.mxu0
    %v347 = vadd.f32 0.0, %v346
    %348 = vdwg.mxu0
    %v349 = vadd.f32 %v212, %v345
    %v350 = vadd.f32 %v213, %v347
    %351 = vst [vmem:[#allocation8] sm:$0xff] %v349
    %352 = vst [vmem:[#allocation8 + $0x8] sm:$0xff] %v350
    // Predicated region
    $region34: #{tpu_custom_call.1} parent=1 // pred_check
      _
    $region35: #{tpu_custom_call.1} parent=1 // pred_check_branch
      %354 = sbr.rel (0) target = $region37
    $region36: #{tpu_custom_call.1} parent=1 // pred_region
      %s356 = ssub.s32 256, 256
      %357 = vsyncadd [#allocation4], %s356
      %s359 = sshll.u32 [#allocation8], 4
      %s360 = int_to_ptr.vmem [resolvable:$true] %s359
      %362 = dma.vmem_to_hbm [thread:$0]  %s360, 256, %s4, [#allocation4]
    $region37: #{tpu_custom_call.1} parent=1 // pred_fallthru
      _
    // Predicated region
    $region38: #{tpu_custom_call.1} parent=1 // pred_check
      _
    $region39: #{tpu_custom_call.1} parent=1 // pred_check_branch
      %364 = sbr.rel (0) target = $region41
    $region40: #{tpu_custom_call.1} parent=1 // pred_region
      %365 = dma.done [#allocation4], 256
    $region41: #{tpu_custom_call.1} parent=1 // pred_fallthru
      _
    %366 = vsyncpa [#allocation3], 1
    %367 = vsyncpa [#allocation6], 1
    %368 = vsyncpa [#allocation4], 1

</llo_original>
